<compile_context>
chip_gen: v6e
topology: v6e:2x2x1
jax: 0.10.0
libtpu: 0.0.40
codegen_flags: <defaults>
</compile_context>

<pallas_src>
import math

import jax
import jax.numpy as jnp
from jax.experimental import pallas as pl
from jax.experimental.pallas import tpu as pltpu

EPS = 1e-5
NEG_SLOPE = 0.2
LANE = 128
VMEM_LIMIT = 32 * 1024 * 1024  # explicit scoped-VMEM request; safe on v5e/v6e/v7x


def _pick_tile(total: int, target: int) -> int:
    """Largest tile <= target that divides `total` and is a multiple of 8
    (sublane aligned); falls back to the full extent (always legal)."""
    if total <= target:
        return total
    for t in range(target, 0, -1):
        if total % t == 0 and t % 8 == 0:
            return t
    return total


# ---------------------------------------------------------------------------
# Phase 1: conv-as-matmul (bf16 in, f32 acc) + per-tile BN partial statistics.
# ---------------------------------------------------------------------------
def _conv_stats_kernel(p_ref, w_ref, conv_ref, psum_ref, psumsq_ref):
    """p_ref:(TM,K) bf16, w_ref:(K,Cout) bf16,
    conv_ref:(TM,Cout) f32, psum_ref/psumsq_ref:(1,1,Cout) f32."""
    conv = jnp.dot(p_ref[...], w_ref[...], preferred_element_type=jnp.float32)
    conv_ref[...] = conv
    # One-pass BN statistics: per-tile sum and sum-of-squares in f32.
    # Combined globally outside the kernel (var = E[x^2] - mean^2).
    psum_ref[...] = jnp.sum(conv, axis=0, keepdims=True)[None]
    psumsq_ref[...] = jnp.sum(conv * conv, axis=0, keepdims=True)[None]


# ---------------------------------------------------------------------------
# Phase 2: normalize (per-channel scale/shift) + LeakyReLU, lane-dense view.
# ---------------------------------------------------------------------------
def _bn_lrelu_kernel(conv_ref, scale_ref, shift_ref, o_ref):
    y = conv_ref[...] * scale_ref[...] + shift_ref[...]
    o_ref[...] = jnp.where(y > 0, y, NEG_SLOPE * y)


@jax.jit
def unet_block_down(x_nchw, weight_oihw, gamma, beta):
    """UNetBlock(down=True, use_bn=True, dropout=False) forward.

    x_nchw:      (N, Cin, H, W)  float32
    weight_oihw: (Cout, Cin, 4, 4)
    gamma, beta: (Cout,)
    returns:     (N, Cout, H//2, W//2) float32 (NCHW, matching the PyTorch module)
    """
    N, Cin, H, W = x_nchw.shape
    Cout = weight_oihw.shape[0]
    Ho, Wo = H // 2, W // 2
    M = N * Ho * Wo
    K = 16 * Cin

    # --- glue: NCHW -> NHWC (bf16), pad, im2col patch extraction ------------
    # TODO(synk): move patch extraction into the kernel (halo DMA of padded
    # NHWC rows + 16 strided-slice matmuls) to avoid the im2col HBM blowup.
    x = jnp.transpose(x_nchw, (0, 2, 3, 1)).astype(jnp.bfloat16)     # NHWC
    xp = jnp.pad(x, ((0, 0), (1, 1), (1, 1), (0, 0)))                # pad=1
    patches = []
    for kh in range(4):
        for kw in range(4):
            # output (hp, wp) reads padded input at (2*hp + kh, 2*wp + kw)
            patches.append(xp[:, kh:kh + 2 * Ho:2, kw:kw + 2 * Wo:2, :])
    patches = jnp.stack(patches, axis=3)                             # (N,Ho,Wo,16,Cin)
    p_mat = patches.reshape(M, K)                                    # bf16

    # weight (Cout,Cin,kh,kw) -> (kh,kw,Cin,Cout) -> (K,Cout), matching patch order
    w_mat = jnp.transpose(weight_oihw, (2, 3, 1, 0)).reshape(K, Cout).astype(jnp.bfloat16)

    # --- phase 1: tiled conv matmul + per-tile BN partials -------------------
    TM = _pick_tile(M, 512)
    n_tiles = M // TM
    conv_flat, psum, psumsq = pl.pallas_call(
        _conv_stats_kernel,
        out_shape=(
            jax.ShapeDtypeStruct((M, Cout), jnp.float32),
            jax.ShapeDtypeStruct((n_tiles, 1, Cout), jnp.float32),
            jax.ShapeDtypeStruct((n_tiles, 1, Cout), jnp.float32),
        ),
        grid=(n_tiles,),
        in_specs=[
            pl.BlockSpec((TM, K), lambda i: (i, 0)),
            pl.BlockSpec((K, Cout), lambda i: (0, 0)),
        ],
        out_specs=[
            pl.BlockSpec((TM, Cout), lambda i: (i, 0)),
            pl.BlockSpec((1, 1, Cout), lambda i: (i, 0, 0)),
            pl.BlockSpec((1, 1, Cout), lambda i: (i, 0, 0)),
        ],
        compiler_params=pltpu.CompilerParams(
            dimension_semantics=("parallel",),
            vmem_limit_bytes=VMEM_LIMIT),
        cost_estimate=pl.CostEstimate(
            flops=2 * M * K * Cout,
            transcendentals=0,
            bytes_accessed=(M * K * 2 + K * Cout * 2
                            + M * Cout * 4 + 2 * n_tiles * Cout * 4)),
    )(p_mat, w_mat)

    # --- tiny global combine: per-channel BN scale / shift -------------------
    total_sum = jnp.sum(psum.reshape(n_tiles, Cout), axis=0)
    total_sq = jnp.sum(psumsq.reshape(n_tiles, Cout), axis=0)
    mean = total_sum / M
    var = jnp.maximum(total_sq / M - mean * mean, 0.0)   # biased, like PyTorch
    scale = gamma.astype(jnp.float32) * jax.lax.rsqrt(var + EPS)
    shift = beta.astype(jnp.float32) - mean * scale

    # --- phase 2: normalize + LeakyReLU on a lane-dense folded view ----------
    G = LANE // math.gcd(Cout, LANE)    # smallest G with (G*Cout) % 128 == 0
    if M % G != 0:
        G = 1                            # fallback: lane-sparse but correct
    LW = G * Cout
    MG = M // G
    TM2 = _pick_tile(MG, 512)
    conv_folded = conv_flat.reshape(MG, LW)   # free: same row-major bytes
    scale_f = jnp.tile(scale, G).reshape(1, LW)
    shift_f = jnp.tile(shift, G).reshape(1, LW)

    out_folded = pl.pallas_call(
        _bn_lrelu_kernel,
        out_shape=jax.ShapeDtypeStruct((MG, LW), jnp.float32),
        grid=(MG // TM2,),
        in_specs=[
            pl.BlockSpec((TM2, LW), lambda i: (i, 0)),
            pl.BlockSpec((1, LW), lambda i: (0, 0)),
            pl.BlockSpec((1, LW), lambda i: (0, 0)),
        ],
        out_specs=pl.BlockSpec((TM2, LW), lambda i: (i, 0)),
        compiler_params=pltpu.CompilerParams(
            dimension_semantics=("parallel",),
            vmem_limit_bytes=VMEM_LIMIT),
    )(conv_folded, scale_f, shift_f)

    # --- glue: back to NCHW (PyTorch module interface) ------------------------
    # TODO(synk): keep NHWC output if the consumer allows, to drop this transpose.
    out = out_folded.reshape(N, Ho, Wo, Cout)
    return jnp.transpose(out, (0, 3, 1, 2))


def _reference(x_nchw, weight_oihw, gamma, beta):
    """Pure-JAX f32 reference (conv + training-mode BN + leaky relu)."""
    y = jax.lax.conv_general_dilated(
        x_nchw, weight_oihw, window_strides=(2, 2),
        padding=((1, 1), (1, 1)),
        dimension_numbers=("NCHW", "OIHW", "NCHW"))
    m = y.mean(axis=(0, 2, 3), keepdims=True)
    v = ((y - m) ** 2).mean(axis=(0, 2, 3), keepdims=True)
    yn = (y - m) / jnp.sqrt(v + EPS) * gamma.reshape(1, -1, 1, 1) + beta.reshape(1, -1, 1, 1)
    return jnp.where(yn > 0, yn, NEG_SLOPE * yn)


if __name__ == "__main__":
    # Small shapes consistent with the module: N=2, Cin=4, H=W=16, Cout=8.
    N, Cin, H, W, Cout = 2, 4, 16, 16, 8

    key = jax.random.PRNGKey(0)
    kx, kw = jax.random.split(key)
    x = jax.random.normal(kx, (N, Cin, H, W), dtype=jnp.float32)
    # Deterministic parameter init (synthetic; no checkpoint load).
    weight = 0.05 * jax.random.normal(kw, (Cout, Cin, 4, 4), dtype=jnp.float32)
    gamma = jnp.ones((Cout,), jnp.float32)   # BatchNorm2d default init
    beta = jnp.zeros((Cout,), jnp.float32)
    # TODO(synk): dropout branch (dropout=True) omitted — default UNetBlock config has no dropout.
    # TODO(synk): up path (ConvTranspose2d + ReLU, down=False) not implemented here.

    out = jax.block_until_ready(unet_block_down(x, weight, gamma, beta))
    ref = _reference(x, weight, gamma, beta)

    assert out.shape == (N, Cout, H // 2, W // 2), out.shape
    assert jnp.allclose(out, ref, atol=2e-2, rtol=2e-2), float(jnp.max(jnp.abs(out - ref)))

    print("KERNEL_OK")
</pallas_src>

<mosaic_0001>
module attributes {stable_mosaic.version = 11 : i64} {
  func.func @_conv_stats_kernel(%arg0: i32, %arg1: memref<128x64xbf16, #tpu.memory_space<vmem>>, %arg2: memref<64x8xbf16, #tpu.memory_space<vmem>>, %arg3: memref<128x8xf32, #tpu.memory_space<vmem>>, %arg4: memref<1x1x8xf32, #tpu.memory_space<vmem>>, %arg5: memref<1x1x8xf32, #tpu.memory_space<vmem>>) attributes {dimension_semantics = [#tpu.dimension_semantics<parallel>], iteration_bounds = array<i64: 1>, scalar_prefetch = 0 : i64, scratch_operands = 0 : i64, tpu.core_type = #tpu.core_type<tc>, window_params = [{transform_indices = @transform_0, window_bounds = array<i64: 128, 64>}, {pipeline_mode = #tpu.pipeline_mode<synchronous>, transform_indices = @transform_1, window_bounds = array<i64: 64, 8>}, {transform_indices = @transform_2, window_bounds = array<i64: 128, 8>}, {transform_indices = @transform_3, window_bounds = array<i64: 1, 1, 8>}, {transform_indices = @transform_4, window_bounds = array<i64: 1, 1, 8>}]} {
    %c0 = arith.constant 0 : index
    %c0_0 = arith.constant 0 : index
    %0 = vector.load %arg1[%c0, %c0_0] : memref<128x64xbf16, #tpu.memory_space<vmem>>, vector<128x64xbf16>
    %c0_1 = arith.constant 0 : index
    %c0_2 = arith.constant 0 : index
    %1 = vector.load %arg2[%c0_1, %c0_2] : memref<64x8xbf16, #tpu.memory_space<vmem>>, vector<64x8xbf16>
    %cst = arith.constant dense<0.000000e+00> : vector<128x8xf32>
    %2 = tpu.matmul %0, %1, %cst {dimension_numbers = #tpu.dot_dimension_numbers<[1], [0], [0], [1], [0, 0, 1, 1], [], []>} : vector<128x64xbf16>, vector<64x8xbf16>, vector<128x8xf32> -> vector<128x8xf32>
    %c0_3 = arith.constant 0 : index
    %c0_4 = arith.constant 0 : index
    %3 = vector.load %arg3[%c0_3, %c0_4] : memref<128x8xf32, #tpu.memory_space<vmem>>, vector<128x8xf32>
    tpu.vector_store %arg3[%c0_3, %c0_4], %2 {strides = array<i32>} : memref<128x8xf32, #tpu.memory_space<vmem>>, vector<128x8xf32>,
    %cst_5 = arith.constant dense<0.000000e+00> : vector<8xf32>
    %4 = vector.multi_reduction <add>, %2, %cst_5 [0] : vector<128x8xf32> to vector<8xf32>
    %5 = vector.shape_cast %4 : vector<8xf32> to vector<1x8xf32>
    %6 = vector.shape_cast %5 : vector<1x8xf32> to vector<1x1x8xf32>
    %c0_6 = arith.constant 0 : index
    %c0_7 = arith.constant 0 : index
    %c0_8 = arith.constant 0 : index
    %7 = vector.load %arg4[%c0_6, %c0_7, %c0_8] : memref<1x1x8xf32, #tpu.memory_space<vmem>>, vector<1x1x8xf32>
    tpu.vector_store %arg4[%c0_6, %c0_7, %c0_8], %6 {strides = array<i32>} : memref<1x1x8xf32, #tpu.memory_space<vmem>>, vector<1x1x8xf32>,
    %8 = arith.mulf %2, %2 : vector<128x8xf32>
    %cst_9 = arith.constant dense<0.000000e+00> : vector<8xf32>
    %9 = vector.multi_reduction <add>, %8, %cst_9 [0] : vector<128x8xf32> to vector<8xf32>
    %10 = vector.shape_cast %9 : vector<8xf32> to vector<1x8xf32>
    %11 = vector.shape_cast %10 : vector<1x8xf32> to vector<1x1x8xf32>
    %c0_10 = arith.constant 0 : index
    %c0_11 = arith.constant 0 : index
    %c0_12 = arith.constant 0 : index
    %12 = vector.load %arg5[%c0_10, %c0_11, %c0_12] : memref<1x1x8xf32, #tpu.memory_space<vmem>>, vector<1x1x8xf32>
    tpu.vector_store %arg5[%c0_10, %c0_11, %c0_12], %11 {strides = array<i32>} : memref<1x1x8xf32, #tpu.memory_space<vmem>>, vector<1x1x8xf32>,
    return
  }
  func.func @transform_0(%arg0: i32) -> (i32, i32) {
    %c0_i32 = arith.constant 0 : i32
    %c0_i32_0 = arith.constant 0 : i32
    return %arg0, %c0_i32 : i32, i32
  }
  func.func @transform_1(%arg0: i32) -> (i32, i32) {
    %c0_i32 = arith.constant 0 : i32
    %c0_i32_0 = arith.constant 0 : i32
    %c0_i32_1 = arith.constant 0 : i32
    return %c0_i32, %c0_i32_0 : i32, i32
  }
  func.func @transform_2(%arg0: i32) -> (i32, i32) {
    %c0_i32 = arith.constant 0 : i32
    %c0_i32_0 = arith.constant 0 : i32
    return %arg0, %c0_i32 : i32, i32
  }
  func.func @transform_3(%arg0: i32) -> (i32, i32, i32) {
    %c0_i32 = arith.constant 0 : i32
    %c0_i32_0 = arith.constant 0 : i32
    %c0_i32_1 = arith.constant 0 : i32
    return %arg0, %c0_i32, %c0_i32_0 : i32, i32, i32
  }
  func.func @transform_4(%arg0: i32) -> (i32, i32, i32) {
    %c0_i32 = arith.constant 0 : i32
    %c0_i32_0 = arith.constant 0 : i32
    %c0_i32_1 = arith.constant 0 : i32
    return %arg0, %c0_i32, %c0_i32_0 : i32, i32, i32
  }
}

module attributes {stable_mosaic.version = 11 : i64} {
  func.func @_bn_lrelu_kernel(%arg0: i32, %arg1: memref<8x128xf32, #tpu.memory_space<vmem>>, %arg2: memref<1x128xf32, #tpu.memory_space<vmem>>, %arg3: memref<1x128xf32, #tpu.memory_space<vmem>>, %arg4: memref<8x128xf32, #tpu.memory_space<vmem>>) attributes {dimension_semantics = [#tpu.dimension_semantics<parallel>], iteration_bounds = array<i64: 1>, scalar_prefetch = 0 : i64, scratch_operands = 0 : i64, tpu.core_type = #tpu.core_type<tc>, window_params = [{transform_indices = @transform_0, window_bounds = array<i64: 8, 128>}, {pipeline_mode = #tpu.pipeline_mode<synchronous>, transform_indices = @transform_1, window_bounds = array<i64: 1, 128>}, {pipeline_mode = #tpu.pipeline_mode<synchronous>, transform_indices = @transform_2, window_bounds = array<i64: 1, 128>}, {transform_indices = @transform_3, window_bounds = array<i64: 8, 128>}]} {
    %c0 = arith.constant 0 : index
    %c0_0 = arith.constant 0 : index
    %0 = vector.load %arg1[%c0, %c0_0] : memref<8x128xf32, #tpu.memory_space<vmem>>, vector<8x128xf32>
    %c0_1 = arith.constant 0 : index
    %c0_2 = arith.constant 0 : index
    %1 = vector.load %arg2[%c0_1, %c0_2] : memref<1x128xf32, #tpu.memory_space<vmem>>, vector<1x128xf32>
    %2 = vector.broadcast %1 : vector<1x128xf32> to vector<8x128xf32>
    %3 = arith.mulf %0, %2 : vector<8x128xf32>
    %c0_3 = arith.constant 0 : index
    %c0_4 = arith.constant 0 : index
    %4 = vector.load %arg3[%c0_3, %c0_4] : memref<1x128xf32, #tpu.memory_space<vmem>>, vector<1x128xf32>
    %5 = vector.broadcast %4 : vector<1x128xf32> to vector<8x128xf32>
    %6 = arith.addf %3, %5 : vector<8x128xf32>
    %cst = arith.constant 0.000000e+00 : f32
    %7 = vector.broadcast %cst : f32 to vector<8x128xf32>
    %8 = arith.cmpf ogt, %6, %7 : vector<8x128xf32>
    %cst_5 = arith.constant 2.000000e-01 : f32
    %9 = vector.broadcast %cst_5 : f32 to vector<8x128xf32>
    %10 = arith.mulf %9, %6 : vector<8x128xf32>
    %11 = arith.select %8, %6, %10 : vector<8x128xi1>, vector<8x128xf32>
    %c0_6 = arith.constant 0 : index
    %c0_7 = arith.constant 0 : index
    %12 = vector.load %arg4[%c0_6, %c0_7] : memref<8x128xf32, #tpu.memory_space<vmem>>, vector<8x128xf32>
    tpu.vector_store %arg4[%c0_6, %c0_7], %11 {strides = array<i32>} : memref<8x128xf32, #tpu.memory_space<vmem>>, vector<8x128xf32>,
    return
  }
  func.func @transform_0(%arg0: i32) -> (i32, i32) {
    %c0_i32 = arith.constant 0 : i32
    %c0_i32_0 = arith.constant 0 : i32
    return %arg0, %c0_i32 : i32, i32
  }
  func.func @transform_1(%arg0: i32) -> (i32, i32) {
    %c0_i32 = arith.constant 0 : i32
    %c0_i32_0 = arith.constant 0 : i32
    %c0_i32_1 = arith.constant 0 : i32
    return %c0_i32, %c0_i32_0 : i32, i32
  }
  func.func @transform_2(%arg0: i32) -> (i32, i32) {
    %c0_i32 = arith.constant 0 : i32
    %c0_i32_0 = arith.constant 0 : i32
    %c0_i32_1 = arith.constant 0 : i32
    return %c0_i32, %c0_i32_0 : i32, i32
  }
  func.func @transform_3(%arg0: i32) -> (i32, i32) {
    %c0_i32 = arith.constant 0 : i32
    %c0_i32_0 = arith.constant 0 : i32
    return %arg0, %c0_i32 : i32, i32
  }
}

</mosaic_0001>

<llo_original>
// kernel: tile.13
$region0: #{tile.13}
  #allocation0 [shape = 's32[1]{0}', space=sflag, size = 0x4, scoped, tag = 'scoped memory for tile.13']
  %s0 = inlined_call_operand.vmem [shape: f32[8], index: 0, kind: input, shape index: {}]
  %s1 = inlined_call_operand.vmem [shape: f32[16,8], index: 1, kind: output, shape index: {}]
  // Predicated region
  $region2: #{tile.13} parent=0 // pred_check
    _
  $region3: #{tile.13} parent=0 // pred_check_branch
    %3 = sbr.rel (0) target = $region5
  $region4: #{tile.13} parent=0 // pred_region
    _
  $region5: #{tile.13} parent=0 // pred_fallthru
    _
  %v4 = vld [vmem:[%s0] ss:$0 sm:$0xff]
  %5 = vst [vmem:[%s1] sm:$0xff] %v4
  %s6 = scalar_lea.vmem %s1, 8
  %7 = vst [vmem:[%s6] sm:$0xff] %v4

// kernel: tile.14
$region0: #{tile.14}
  %s0 = inlined_call_operand.vmem [shape: f32[16,8], index: 0, kind: input, shape index: {}]
  %s1 = inlined_call_operand.vmem [shape: f32[1,128], index: 1, kind: output, shape index: {}]
  $region1: #{tile.14} parent=0
    #allocation0 [shape = 'u8[4096]{0}', space=vmem, size = 0x1000, scoped, tag = 'scoped mem for output reshape']
    %v2 = vld [vmem:[%s0] sm:$0x1]
    %vm3 = vcmask 64512
    %4 = vst.msk [vmem:[#allocation0] sm:$0x1] %vm3, %v2
    %s5 = scalar_lea.vmem %s0, 15
    %v6 = vld [vmem:[%s5] sm:$0x1]
    %7 = vrot.lane.b32.xlu0 %v6, 120
    %v8 = vpop.permute.xlu0 %7
    %vm9 = vcmask 1048512
    %10 = vst.msk [vmem:[#allocation0] sm:$0x1] %vm9, %v8
    %s11 = scalar_lea.vmem %s0, 14
    %v12 = vld [vmem:[%s11] sm:$0x1]
    %13 = vrot.lane.b32.xlu0 %v12, 112
    %v14 = vpop.permute.xlu0 %13
    %vm15 = vcmask 982912
    %16 = vst.msk [vmem:[#allocation0] sm:$0x1] %vm15, %v14
    %s17 = scalar_lea.vmem %s0, 13
    %v18 = vld [vmem:[%s17] sm:$0x1]
    %19 = vrot.lane.b32.xlu0 %v18, 104
    %v20 = vpop.permute.xlu0 %19
    %vm21 = vcmask 917312
    %22 = vst.msk [vmem:[#allocation0] sm:$0x1] %vm21, %v20
    %s23 = scalar_lea.vmem %s0, 12
    %v24 = vld [vmem:[%s23] sm:$0x1]
    %25 = vrot.lane.b32.xlu0 %v24, 96
    %v26 = vpop.permute.xlu0 %25
    %vm27 = vcmask 851712
    %28 = vst.msk [vmem:[#allocation0] sm:$0x1] %vm27, %v26
    %s29 = scalar_lea.vmem %s0, 11
    %v30 = vld [vmem:[%s29] sm:$0x1]
    %31 = vrot.lane.b32.xlu0 %v30, 88
    %v32 = vpop.permute.xlu0 %31
    %vm33 = vcmask 786112
    %34 = vst.msk [vmem:[#allocation0] sm:$0x1] %vm33, %v32
    %s35 = scalar_lea.vmem %s0, 10
    %v36 = vld [vmem:[%s35] sm:$0x1]
    %37 = vrot.lane.b32.xlu0 %v36, 80
    %v38 = vpop.permute.xlu0 %37
    %vm39 = vcmask 720512
    %40 = vst.msk [vmem:[#allocation0] sm:$0x1] %vm39, %v38
    %s41 = scalar_lea.vmem %s0, 9
    %v42 = vld [vmem:[%s41] sm:$0x1]
    %43 = vrot.lane.b32.xlu0 %v42, 72
    %v44 = vpop.permute.xlu0 %43
    %vm45 = vcmask 654912
    %46 = vst.msk [vmem:[#allocation0] sm:$0x1] %vm45, %v44
    %s47 = scalar_lea.vmem %s0, 8
    %v48 = vld [vmem:[%s47] sm:$0x1]
    %49 = vrot.lane.b32.xlu0 %v48, 64
    %v50 = vpop.permute.xlu0 %49
    %vm51 = vcmask 589312
    %52 = vst.msk [vmem:[#allocation0] sm:$0x1] %vm51, %v50
    %s53 = scalar_lea.vmem %s0, 7
    %v54 = vld [vmem:[%s53] sm:$0x1]
    %55 = vrot.lane.b32.xlu0 %v54, 56
    %v56 = vpop.permute.xlu0 %55
    %vm57 = vcmask 523712
    %58 = vst.msk [vmem:[#allocation0] sm:$0x1] %vm57, %v56
    %s59 = scalar_lea.vmem %s0, 6
    %v60 = vld [vmem:[%s59] sm:$0x1]
    %61 = vrot.lane.b32.xlu0 %v60, 48
    %v62 = vpop.permute.xlu0 %61
    %vm63 = vcmask 458112
    %64 = vst.msk [vmem:[#allocation0] sm:$0x1] %vm63, %v62
    %s65 = scalar_lea.vmem %s0, 5
    %v66 = vld [vmem:[%s65] sm:$0x1]
    %67 = vrot.lane.b32.xlu0 %v66, 40
    %v68 = vpop.permute.xlu0 %67
    %vm69 = vcmask 392512
    %70 = vst.msk [vmem:[#allocation0] sm:$0x1] %vm69, %v68
    %s71 = scalar_lea.vmem %s0, 4
    %v72 = vld [vmem:[%s71] sm:$0x1]
    %73 = vrot.lane.b32.xlu0 %v72, 32
    %v74 = vpop.permute.xlu0 %73
    %vm75 = vcmask 326912
    %76 = vst.msk [vmem:[#allocation0] sm:$0x1] %vm75, %v74
    %s77 = scalar_lea.vmem %s0, 3
    %v78 = vld [vmem:[%s77] sm:$0x1]
    %79 = vrot.lane.b32.xlu0 %v78, 24
    %v80 = vpop.permute.xlu0 %79
    %vm81 = vcmask 261312
    %82 = vst.msk [vmem:[#allocation0] sm:$0x1] %vm81, %v80
    %s83 = scalar_lea.vmem %s0, 2
    %v84 = vld [vmem:[%s83] sm:$0x1]
    %85 = vrot.lane.b32.xlu0 %v84, 16
    %v86 = vpop.permute.xlu0 %85
    %vm87 = vcmask 195712
    %88 = vst.msk [vmem:[#allocation0] sm:$0x1] %vm87, %v86
    %s89 = scalar_lea.vmem %s0, 1
    %v90 = vld [vmem:[%s89] sm:$0x1]
    %91 = vrot.lane.b32.xlu0 %v90, 8
    %v92 = vpop.permute.xlu0 %91
    %vm93 = vcmask 130112
    %94 = vst.msk [vmem:[#allocation0] sm:$0x1] %vm93, %v92
    %s96 = sshll.u32 1, 1
    %s97 = ssub.s32 %s96, 1
    %v99 = vld [vmem:[#allocation0] sm:%s97]
    %s100 = sshll.u32 1, 1
    %s101 = ssub.s32 %s100, 1
    %102 = vst [vmem:[%s1] sm:%s101] %v99

// kernel: unet_block_down.3
$region0: #{unet_block_down.3}
  #allocation0 [shape = 'u32[]', space=smem, size = 0x4, offset = 0x4, fixed_abs, tag = 'smem constant byte address 0x4 - core index']
  #allocation1 [shape = 'u32[144,128]{1,0:T(1,128)}', space=vmem, size = 0x12000, scoped, tag = 'internal scratch']
  %s0 = inlined_call_operand.vmem [shape: f32[8,128], index: 0, kind: input, shape index: {}]
  %s1 = inlined_call_operand.vmem [shape: f32[1,128], index: 1, kind: input, shape index: {}]
  %s2 = inlined_call_operand.vmem [shape: f32[1,128], index: 2, kind: input, shape index: {}]
  %s3 = inlined_call_operand.vmem [shape: f32[8,128], index: 3, kind: output, shape index: {}]
  %s4 = sld [smem:[#allocation0]]
  $region22: #{unet_block_down.3} parent=0
    _
  %s6 = ssub.s32 1, %s4
  %s7 = scalar_select 0, %s6, %s4
  // Predicated region
  $region2: #{unet_block_down.3} parent=0 // pred_check
    _
  $region3: #{unet_block_down.3} parent=0 // pred_check_branch
    %9 = sbr.rel (0) target = $region5
  $region4: #{unet_block_down.3} parent=0 // pred_region
    _
  $region5: #{unet_block_down.3} parent=0 // pred_fallthru
    _
  // Predicated region
  $region6: #{unet_block_down.3} parent=0 // pred_check
    _
  $region7: #{unet_block_down.3} parent=0 // pred_check_branch
    %11 = sbr.rel (0) target = $region9
  $region8: #{unet_block_down.3} parent=0 // pred_region
    _
  $region9: #{unet_block_down.3} parent=0 // pred_fallthru
    _
  // Predicated region
  $region10: #{unet_block_down.3} parent=0 // pred_check
    _
  $region11: #{unet_block_down.3} parent=0 // pred_check_branch
    %13 = sbr.rel (0) target = $region13
  $region12: #{unet_block_down.3} parent=0 // pred_region
    _
  $region13: #{unet_block_down.3} parent=0 // pred_fallthru
    _
  %v14 = vld [vmem:[%s0] sm:$0xff]
  %v15 = vld [vmem:[%s1] sm:$0x1]
  %v17 = vlaneseq
  %v18 = vshrl.u32 %v17, 7
  %v19 = vsub.s32 0, %v18
  %v20 = vrot.slane %v15, %v19
  %v22 = vmul.f32 %v14, %v20
  %v23 = vld [vmem:[%s2] sm:$0x1]
  %v25 = vlaneseq
  %v26 = vshrl.u32 %v25, 7
  %v27 = vsub.s32 0, %v26
  %v28 = vrot.slane %v23, %v27
  %v30 = vadd.f32 %v22, %v28
  %vm31 = vcmp.gt.f32.partialorder %v30, 0.0
  %v32 = vmul.f32 %v30, 0.2
  %v33 = vsel %vm31, %v30, %v32
  %34 = vst [vmem:[%s3] sm:$0xff] %v33
  // Predicated region
  $region14: #{unet_block_down.3} parent=0 // pred_check
    _
  $region15: #{unet_block_down.3} parent=0 // pred_check_branch
    %36 = sbr.rel (0) target = $region17
  $region16: #{unet_block_down.3} parent=0 // pred_region
    _
  $region17: #{unet_block_down.3} parent=0 // pred_fallthru
    _
  // Predicated region
  $region18: #{unet_block_down.3} parent=0 // pred_check
    _
  $region19: #{unet_block_down.3} parent=0 // pred_check_branch
    %38 = sbr.rel (0) target = $region21
  $region20: #{unet_block_down.3} parent=0 // pred_region
    _
  $region21: #{unet_block_down.3} parent=0 // pred_fallthru
    _

// kernel: unet_block_down.2
$region0: #{unet_block_down.2}
  #allocation0 [shape = 'u32[]', space=smem, size = 0x4, offset = 0x4, fixed_abs, tag = 'smem constant byte address 0x4 - core index']
  #allocation1 [shape = 'u32[144,128]{1,0:T(1,128)}', space=vmem, size = 0x12000, scoped, tag = 'internal scratch']
  %s0 = inlined_call_operand.vmem [shape: bf16[128,64], index: 0, kind: input, shape index: {}]
  %s1 = inlined_call_operand.vmem [shape: bf16[64,8], index: 1, kind: input, shape index: {}]
  %s2 = inlined_call_operand.vmem [shape: f32[128,8], index: 2, kind: output, shape index: {0}]
  %s3 = inlined_call_operand.vmem [shape: f32[1,1,8], index: 3, kind: output, shape index: {1}]
  %s4 = inlined_call_operand.vmem [shape: f32[1,1,8], index: 4, kind: output, shape index: {2}]
  %5 = xla_tuple %s2, %s3, %s4
  %s6 = sld [smem:[#allocation0]]
  $region34: #{unet_block_down.2} parent=0
    _
  %s8 = ssub.s32 1, %s6
  %s9 = scalar_select 0, %s8, %s6
  // Predicated region
  $region2: #{unet_block_down.2} parent=0 // pred_check
    _
  $region3: #{unet_block_down.2} parent=0 // pred_check_branch
    %11 = sbr.rel (0) target = $region5
  $region4: #{unet_block_down.2} parent=0 // pred_region
    _
  $region5: #{unet_block_down.2} parent=0 // pred_fallthru
    _
  // Predicated region
  $region6: #{unet_block_down.2} parent=0 // pred_check
    _
  $region7: #{unet_block_down.2} parent=0 // pred_check_branch
    %13 = sbr.rel (0) target = $region9
  $region8: #{unet_block_down.2} parent=0 // pred_region
    _
  $region9: #{unet_block_down.2} parent=0 // pred_fallthru
    _
  %v15 = vld [vmem:[%s0] sm:$0xf]
  %v16 = vld [vmem:[%s0 + $0x4] sm:$0xf]
  %v17 = vld [vmem:[%s0 + $0x8] sm:$0xf]
  %v18 = vld [vmem:[%s0 + $0xc] sm:$0xf]
  %v19 = vld [vmem:[%s0 + $0x10] sm:$0xf]
  %v20 = vld [vmem:[%s0 + $0x14] sm:$0xf]
  %v21 = vld [vmem:[%s0 + $0x18] sm:$0xf]
  %v22 = vld [vmem:[%s0 + $0x1c] sm:$0xf]
  %v23 = vld [vmem:[%s0 + $0x20] sm:$0xf]
  %v24 = vld [vmem:[%s0 + $0x24] sm:$0xf]
  %v25 = vld [vmem:[%s0 + $0x28] sm:$0xf]
  %v26 = vld [vmem:[%s0 + $0x2c] sm:$0xf]
  %v27 = vld [vmem:[%s0 + $0x30] sm:$0xf]
  %v28 = vld [vmem:[%s0 + $0x34] sm:$0xf]
  %v29 = vld [vmem:[%s0 + $0x38] sm:$0xf]
  %v30 = vld [vmem:[%s0 + $0x3c] sm:$0xf]
  %v31 = vld [vmem:[%s1] sm:$0xf]
  %v32 = vld [vmem:[%s1 + $0x4] sm:$0xf]
  %v33 = vld [vmem:[%s1 + $0x8] sm:$0xf]
  %v34 = vld [vmem:[%s1 + $0xc] sm:$0xf]
  %v35 = vld [vmem:[%s1 + $0x10] sm:$0xf]
  %v36 = vld [vmem:[%s1 + $0x14] sm:$0xf]
  %v37 = vld [vmem:[%s1 + $0x18] sm:$0xf]
  %v38 = vld [vmem:[%s1 + $0x1c] sm:$0xf]
  %v55 = vunpack.c.l.b16 %v15
  %v56 = vunpack.c.l.b16 %v16
  %v57 = vunpack.c.l.b16 %v17
  %v58 = vunpack.c.l.b16 %v18
  %v59 = vunpack.c.l.b16 %v19
  %v60 = vunpack.c.l.b16 %v20
  %v61 = vunpack.c.l.b16 %v21
  %v62 = vunpack.c.l.b16 %v22
  %v63 = vunpack.c.l.b16 %v23
  %v64 = vunpack.c.l.b16 %v24
  %v65 = vunpack.c.l.b16 %v25
  %v66 = vunpack.c.l.b16 %v26
  %v67 = vunpack.c.l.b16 %v27
  %v68 = vunpack.c.l.b16 %v28
  %v69 = vunpack.c.l.b16 %v29
  %v70 = vunpack.c.l.b16 %v30
  %v71 = vpack.c.b16 %v56, %v55
  %v72 = vpack.c.b16 %v58, %v57
  %v73 = vpack.c.b16 %v60, %v59
  %v74 = vpack.c.b16 %v62, %v61
  %v75 = vpack.c.b16 %v64, %v63
  %v76 = vpack.c.b16 %v66, %v65
  %v77 = vpack.c.b16 %v68, %v67
  %v78 = vpack.c.b16 %v70, %v69
  %v87 = vunpack.c.l.b16 %v31
  %v88 = vunpack.c.l.b16 %v32
  %v89 = vunpack.c.l.b16 %v33
  %v90 = vunpack.c.l.b16 %v34
  %v91 = vunpack.c.l.b16 %v35
  %v92 = vunpack.c.l.b16 %v36
  %v93 = vunpack.c.l.b16 %v37
  %v94 = vunpack.c.l.b16 %v38
  %v95 = vpack.c.b16 %v88, %v87
  %v96 = vpack.c.b16 %v90, %v89
  %v97 = vpack.c.b16 %v92, %v91
  %v98 = vpack.c.b16 %v94, %v93
  %vm103 = vcmask 523264
  %v105 = vsel %vm103, %v71, 0
  %v108 = vsel %vm103, %v72, 0
  %v111 = vsel %vm103, %v73, 0
  %v114 = vsel %vm103, %v74, 0
  %v117 = vsel %vm103, %v75, 0
  %v120 = vsel %vm103, %v76, 0
  %v123 = vsel %vm103, %v77, 0
  %v126 = vsel %vm103, %v78, 0
  %128 = vmatprep.subr.bf16.mxu0 0
  %129 = vmatpush1.bf16.msra.mxu0 0
  %130 = vmatprep.subr.bf16.mxu0 0
  %131 = vmatpush1.bf16.msra.mxu0 0
  %132 = vmatprep.subr.bf16.mxu0 0
  %133 = vmatpush1.bf16.msra.mxu0 0
  %134 = vmatprep.subr.bf16.mxu0 0
  %135 = vmatpush1.bf16.msra.mxu0 0
  %136 = vmatprep.subr.bf16.mxu0 0
  %137 = vmatpush1.bf16.msra.mxu0 %v98
  %138 = vmatprep.subr.bf16.mxu0 0
  %139 = vmatpush1.bf16.msra.mxu0 %v97
  %140 = vmatprep.subr.bf16.mxu0 0
  %141 = vmatpush1.bf16.msra.mxu0 %v96
  %142 = vmatprep.subr.bf16.mxu0 0
  %143 = vmatpush1.bf16.msra.mxu0 %v95
  %144 = vmatprep.subr.bf16.mxu0 0
  %145 = vmatpush2.bf16.msra.mxu0 0
  %146 = vmatprep.subr.bf16.mxu0 0
  %147 = vmatpush2.bf16.msra.mxu0 0
  %148 = vmatprep.subr.bf16.mxu0 0
  %149 = vmatpush2.bf16.msra.mxu0 0
  %150 = vmatprep.subr.bf16.mxu0 0
  %151 = vmatpush2.bf16.msra.mxu0 0
  %152 = vmatprep.subr.bf16.mxu0 0
  %153 = vmatpush2.bf16.msra.mxu0 0
  %154 = vmatprep.subr.bf16.mxu0 0
  %155 = vmatpush2.bf16.msra.mxu0 0
  %156 = vmatprep.subr.bf16.mxu0 0
  %157 = vmatpush2.bf16.msra.mxu0 0
  %158 = vmatprep.subr.bf16.mxu0 0
  %159 = vmatpush2.bf16.msra.mxu0 0
  %160 = vmatprep.mubr.bf16.mxu0 0
  %161 = vmatmul.mubr.bf16.gmra.mxu0 %v105
  %v162 = vpop.f32.mrf.mxu0
  %v163 = vadd.f32 0.0, %v162
  %v164 = vpop.f32.mrf.mxu0
  %v165 = vpop.f32.mrf.mxu0
  %v166 = vadd.f32 0.0, %v165
  %v167 = vpop.f32.mrf.mxu0
  %168 = vmatprep.mubr.bf16.mxu0 0
  %169 = vmatmul.mubr.bf16.gmra.mxu0 %v108
  %v170 = vpop.f32.mrf.mxu0
  %v171 = vadd.f32 0.0, %v170
  %v172 = vpop.f32.mrf.mxu0
  %v173 = vpop.f32.mrf.mxu0
  %v174 = vadd.f32 0.0, %v173
  %v175 = vpop.f32.mrf.mxu0
  %176 = vmatprep.mubr.bf16.mxu0 0
  %177 = vmatmul.mubr.bf16.gmra.mxu0 %v111
  %v178 = vpop.f32.mrf.mxu0
  %v179 = vadd.f32 0.0, %v178
  %v180 = vpop.f32.mrf.mxu0
  %v181 = vpop.f32.mrf.mxu0
  %v182 = vadd.f32 0.0, %v181
  %v183 = vpop.f32.mrf.mxu0
  %184 = vmatprep.mubr.bf16.mxu0 0
  %185 = vmatmul.mubr.bf16.gmra.mxu0 %v114
  %v186 = vpop.f32.mrf.mxu0
  %v187 = vadd.f32 0.0, %v186
  %v188 = vpop.f32.mrf.mxu0
  %v189 = vpop.f32.mrf.mxu0
  %v190 = vadd.f32 0.0, %v189
  %v191 = vpop.f32.mrf.mxu0
  %192 = vmatprep.mubr.bf16.mxu0 0
  %193 = vmatmul.mubr.bf16.gmra.mxu0 %v117
  %v194 = vpop.f32.mrf.mxu0
  %v195 = vadd.f32 0.0, %v194
  %v196 = vpop.f32.mrf.mxu0
  %v197 = vpop.f32.mrf.mxu0
  %v198 = vadd.f32 0.0, %v197
  %v199 = vpop.f32.mrf.mxu0
  %200 = vmatprep.mubr.bf16.mxu0 0
  %201 = vmatmul.mubr.bf16.gmra.mxu0 %v120
  %v202 = vpop.f32.mrf.mxu0
  %v203 = vadd.f32 0.0, %v202
  %v204 = vpop.f32.mrf.mxu0
  %v205 = vpop.f32.mrf.mxu0
  %v206 = vadd.f32 0.0, %v205
  %v207 = vpop.f32.mrf.mxu0
  %208 = vmatprep.mubr.bf16.mxu0 0
  %209 = vmatmul.mubr.bf16.gmra.mxu0 %v123
  %v210 = vpop.f32.mrf.mxu0
  %v211 = vadd.f32 0.0, %v210
  %v212 = vpop.f32.mrf.mxu0
  %v213 = vpop.f32.mrf.mxu0
  %v214 = vadd.f32 0.0, %v213
  %v215 = vpop.f32.mrf.mxu0
  %216 = vmatprep.mubr.bf16.mxu0 0
  %217 = vmatmul.mubr.bf16.gmra.mxu0 %v126
  %v218 = vpop.f32.mrf.mxu0
  %v219 = vadd.f32 0.0, %v218
  %v220 = vpop.f32.mrf.mxu0
  %v221 = vpop.f32.mrf.mxu0
  %v222 = vadd.f32 0.0, %v221
  %v223 = vpop.f32.mrf.mxu0
  %224 = vdwg.mxu0
  %vm225 = vcmask 64512
  %226 = vst.msk [vmem:[%s2] sm:$0xff] %vm225, %v163
  %227 = vst.msk [vmem:[%s2 + $0x8] sm:$0xff] %vm225, %v166
  %228 = vst.msk [vmem:[%s2 + $0x10] sm:$0xff] %vm225, %v171
  %229 = vst.msk [vmem:[%s2 + $0x18] sm:$0xff] %vm225, %v174
  %230 = vst.msk [vmem:[%s2 + $0x20] sm:$0xff] %vm225, %v179
  %231 = vst.msk [vmem:[%s2 + $0x28] sm:$0xff] %vm225, %v182
  %232 = vst.msk [vmem:[%s2 + $0x30] sm:$0xff] %vm225, %v187
  %233 = vst.msk [vmem:[%s2 + $0x38] sm:$0xff] %vm225, %v190
  %234 = vst.msk [vmem:[%s2 + $0x40] sm:$0xff] %vm225, %v195
  %235 = vst.msk [vmem:[%s2 + $0x48] sm:$0xff] %vm225, %v198
  %236 = vst.msk [vmem:[%s2 + $0x50] sm:$0xff] %vm225, %v203
  %237 = vst.msk [vmem:[%s2 + $0x58] sm:$0xff] %vm225, %v206
  %238 = vst.msk [vmem:[%s2 + $0x60] sm:$0xff] %vm225, %v211
  %239 = vst.msk [vmem:[%s2 + $0x68] sm:$0xff] %vm225, %v214
  %240 = vst.msk [vmem:[%s2 + $0x70] sm:$0xff] %vm225, %v219
  %241 = vst.msk [vmem:[%s2 + $0x78] sm:$0xff] %vm225, %v222
  %v242 = vsel %vm225, %v163, 0.0
  %v243 = vsel %vm225, %v166, 0.0
  %v244 = vadd.f32 %v242, %v243
  %v245 = vsel %vm225, %v171, 0.0
  %v246 = vadd.f32 %v244, %v245
  %v247 = vsel %vm225, %v174, 0.0
  %v248 = vadd.f32 %v246, %v247
  %v249 = vsel %vm225, %v179, 0.0
  %v250 = vadd.f32 %v248, %v249
  %v251 = vsel %vm225, %v182, 0.0
  %v252 = vadd.f32 %v250, %v251
  %v253 = vsel %vm225, %v187, 0.0
  %v254 = vadd.f32 %v252, %v253
  %v255 = vsel %vm225, %v190, 0.0
  %v256 = vadd.f32 %v254, %v255
  %v257 = vsel %vm225, %v195, 0.0
  %v258 = vadd.f32 %v256, %v257
  %v259 = vsel %vm225, %v198, 0.0
  %v260 = vadd.f32 %v258, %v259
  %v261 = vsel %vm225, %v203, 0.0
  %v262 = vadd.f32 %v260, %v261
  %v263 = vsel %vm225, %v206, 0.0
  %v264 = vadd.f32 %v262, %v263
  %v265 = vsel %vm225, %v211, 0.0
  %v266 = vadd.f32 %v264, %v265
  %v267 = vsel %vm225, %v214, 0.0
  %v268 = vadd.f32 %v266, %v267
  %v269 = vsel %vm225, %v219, 0.0
  %v270 = vadd.f32 %v268, %v269
  %v271 = vsel %vm225, %v222, 0.0
  %v272 = vadd.f32 %v270, %v271
  %v273 = vrot.slane %v272, 4
  %v274 = vadd.f32 %v272, %v273
  %v275 = vrot.slane %v274, 2
  %v276 = vadd.f32 %v274, %v275
  %v277 = vrot.slane %v276, 1
  %v278 = vadd.f32 %v276, %v277
  %vm279 = vcmask 57344
  %280 = vst.msk [vmem:[%s3] sm:$0x1] %vm279, %v278
  %v281 = vmul.f32 %v163, %v163
  %v282 = vmul.f32 %v166, %v166
  %v283 = vmul.f32 %v171, %v171
  %v284 = vmul.f32 %v174, %v174
  %v285 = vmul.f32 %v179, %v179
  %v286 = vmul.f32 %v182, %v182
  %v287 = vmul.f32 %v187, %v187
  %v288 = vmul.f32 %v190, %v190
  %v289 = vmul.f32 %v195, %v195
  %v290 = vmul.f32 %v198, %v198
  %v291 = vmul.f32 %v203, %v203
  %v292 = vmul.f32 %v206, %v206
  %v293 = vmul.f32 %v211, %v211
  %v294 = vmul.f32 %v214, %v214
  %v295 = vmul.f32 %v219, %v219
  %v296 = vmul.f32 %v222, %v222
  %v297 = vsel %vm225, %v281, 0.0
  %v298 = vsel %vm225, %v282, 0.0
  %v299 = vadd.f32 %v297, %v298
  %v300 = vsel %vm225, %v283, 0.0
  %v301 = vadd.f32 %v299, %v300
  %v302 = vsel %vm225, %v284, 0.0
  %v303 = vadd.f32 %v301, %v302
  %v304 = vsel %vm225, %v285, 0.0
  %v305 = vadd.f32 %v303, %v304
  %v306 = vsel %vm225, %v286, 0.0
  %v307 = vadd.f32 %v305, %v306
  %v308 = vsel %vm225, %v287, 0.0
  %v309 = vadd.f32 %v307, %v308
  %v310 = vsel %vm225, %v288, 0.0
  %v311 = vadd.f32 %v309, %v310
  %v312 = vsel %vm225, %v289, 0.0
  %v313 = vadd.f32 %v311, %v312
  %v314 = vsel %vm225, %v290, 0.0
  %v315 = vadd.f32 %v313, %v314
  %v316 = vsel %vm225, %v291, 0.0
  %v317 = vadd.f32 %v315, %v316
  %v318 = vsel %vm225, %v292, 0.0
  %v319 = vadd.f32 %v317, %v318
  %v320 = vsel %vm225, %v293, 0.0
  %v321 = vadd.f32 %v319, %v320
  %v322 = vsel %vm225, %v294, 0.0
  %v323 = vadd.f32 %v321, %v322
  %v324 = vsel %vm225, %v295, 0.0
  %v325 = vadd.f32 %v323, %v324
  %v326 = vsel %vm225, %v296, 0.0
  %v327 = vadd.f32 %v325, %v326
  %v328 = vrot.slane %v327, 4
  %v329 = vadd.f32 %v327, %v328
  %v330 = vrot.slane %v329, 2
  %v331 = vadd.f32 %v329, %v330
  %v332 = vrot.slane %v331, 1
  %v333 = vadd.f32 %v331, %v332
  %334 = vst.msk [vmem:[%s4] sm:$0x1] %vm279, %v333
  // Predicated region
  $region10: #{unet_block_down.2} parent=0 // pred_check
    _
  $region11: #{unet_block_down.2} parent=0 // pred_check_branch
    %336 = sbr.rel (0) target = $region13
  $region12: #{unet_block_down.2} parent=0 // pred_region
    _
  $region13: #{unet_block_down.2} parent=0 // pred_fallthru
    _
  // Predicated region
  $region14: #{unet_block_down.2} parent=0 // pred_check
    _
  $region15: #{unet_block_down.2} parent=0 // pred_check_branch
    %338 = sbr.rel (0) target = $region17
  $region16: #{unet_block_down.2} parent=0 // pred_region
    _
  $region17: #{unet_block_down.2} parent=0 // pred_fallthru
    _
  // Predicated region
  $region18: #{unet_block_down.2} parent=0 // pred_check
    _
  $region19: #{unet_block_down.2} parent=0 // pred_check_branch
    %340 = sbr.rel (0) target = $region21
  $region20: #{unet_block_down.2} parent=0 // pred_region
    _
  $region21: #{unet_block_down.2} parent=0 // pred_fallthru
    _
  // Predicated region
  $region22: #{unet_block_down.2} parent=0 // pred_check
    _
  $region23: #{unet_block_down.2} parent=0 // pred_check_branch
    %342 = sbr.rel (0) target = $region25
  $region24: #{unet_block_down.2} parent=0 // pred_region
    _
  $region25: #{unet_block_down.2} parent=0 // pred_fallthru
    _
  // Predicated region
  $region26: #{unet_block_down.2} parent=0 // pred_check
    _
  $region27: #{unet_block_down.2} parent=0 // pred_check_branch
    %344 = sbr.rel (0) target = $region29
  $region28: #{unet_block_down.2} parent=0 // pred_region
    _
  $region29: #{unet_block_down.2} parent=0 // pred_fallthru
    _
  // Predicated region
  $region30: #{unet_block_down.2} parent=0 // pred_check
    _
  $region31: #{unet_block_down.2} parent=0 // pred_check_branch
    %346 = sbr.rel (0) target = $region33
  $region32: #{unet_block_down.2} parent=0 // pred_region
    _
  $region33: #{unet_block_down.2} parent=0 // pred_fallthru
    _

</llo_original>
